<compile_context>
chip_gen: v7x
topology: tpu7x:2x2x1
jax: 0.10.0
libtpu: 0.0.40
codegen_flags: <defaults>
</compile_context>

<pallas_src>
import functools

import jax
import jax.numpy as jnp
import numpy as np
from jax.experimental import pallas as pl
from jax.experimental.pallas import tpu as pltpu

LANES = 128


def _round_up(v, m):
    return (v + m - 1) // m * m


# -----------------------------------------------------------------------------
# Kernel
# -----------------------------------------------------------------------------
def attention_kernel(x_ref, slab_ref, out_ref, *, static):
    """Whole forward hot path in one gridless invocation (shapes are tiny).

    x_ref    : (B, C)                 input
    slab_ref : (rows, 128)            single packed weight/constant slab
    out_ref  : (B, 256)               lanes 0:128 = x_sum (zero padded)
                                      lanes 128:256 = softmax(fc(x_sum)) padded
    """
    B = static["B"]
    H = static["H"]
    NF = static["NF"]
    O = static["O"]
    xs_pad = static["xs_pad"]
    out_pad = static["out_pad"]
    meta = static["meta"]

    def load(name):
        off, rows, width = meta[name]        # static python ints
        return slab_ref[pl.ds(off, rows), pl.ds(0, width)]

    x = x_ref[...]                                                    # (B, C)

    # ---- z in (B*NF, H) ROW layout, built with matmuls only (no shuffles) ----
    # xa[r]      = x[r // NF]                      (row repeat via tiny matmul)
    # xt[r]      = xa[r] tiled NF times over lanes (lane tile via tiny matmul)
    # x_block[r] = xt[r] masked to lane segment (r % NF)
    # z[r]       = tanh(x[r//NF] @ wf[r%NF] + bf[r%NF])
    xa = jnp.dot(load("P"), x, preferred_element_type=jnp.float32)        # (R, C)
    xt = jnp.dot(xa, load("TileMat"), preferred_element_type=jnp.float32)  # (R, NF*C)
    x_block = xt * load("BlockMask")                                       # (R, NF*C)
    z = jnp.tanh(
        jnp.dot(x_block, load("WfStack"), preferred_element_type=jnp.float32)
        + load("BfRows"))                                                  # (R, H)

    # ---- q / k / v (v is produced already lane-padded to 128) ----------------
    q = jnp.dot(z, load("Wq"), preferred_element_type=jnp.float32) + load("Bq")
    k = jnp.dot(z, load("Wk"), preferred_element_type=jnp.float32) + load("Bk")
    v = jnp.dot(z, load("WvPad"), preferred_element_type=jnp.float32) + load("BvPad")
    # q, k: (R, H)   v: (R, xs_pad)

    # ---- all-pairs Gram; per-batch score matrices are the diagonal blocks ----
    s_full = jax.lax.dot_general(q, k, (((1,), (1,)), ((), ())),
                                 preferred_element_type=jnp.float32)       # (R, R)
    s_blocks = [s_full[b * NF:(b + 1) * NF, b * NF:(b + 1) * NF]
                for b in range(B)]                                         # (NF, NF)

    # ---- softmax over the BATCH axis (torch legacy nn.Softmax(), 3-D input) --
    m = s_blocks[0]
    for sb in s_blocks[1:]:
        m = jnp.maximum(m, sb)
    e_blocks = [jnp.exp(sb - m) for sb in s_blocks]
    denom = e_blocks[0]
    for eb in e_blocks[1:]:
        denom = denom + eb
    r_blocks = [eb / denom for eb in e_blocks]      # exact division (review)

    # ---- x_sum[b] = sum_i (score_b @ v_b)[i] = colsum(score_b) @ v_b ---------
    # Fold the per-batch apply into ONE matmul against the full v:
    #   cs_two[b, NF*b + j] = colsum_b[j],  zero elsewhere
    cs = [jnp.sum(rb, axis=0, keepdims=True) for rb in r_blocks]           # (1, NF)
    cs_row = jnp.concatenate(cs, axis=1)                                   # (1, B*NF)
    rid = jax.lax.broadcasted_iota(jnp.int32, (B, B * NF), 0)
    cid = jax.lax.broadcasted_iota(jnp.int32, (B, B * NF), 1)
    own = (cid >= rid * NF) & (cid < (rid + 1) * NF)
    cs_two = jnp.where(own, cs_row, 0.0)                                   # (B, B*NF)
    x_sum = jnp.dot(cs_two, v, preferred_element_type=jnp.float32)         # (B, xs_pad)

    # ---- out = softmax(fc(x_sum), dim=1); padded lanes masked via where ------
    logits = (jnp.dot(x_sum, load("WfcPad"), preferred_element_type=jnp.float32)
              + load("BfcPad"))                                            # (B, out_pad)
    lane = jax.lax.broadcasted_iota(jnp.int32, (B, out_pad), 1)
    valid = lane < O
    mmax = jnp.max(jnp.where(valid, logits, -1e30), axis=1, keepdims=True)
    e = jnp.where(valid, jnp.exp(logits - mmax), 0.0)
    out_sm = e / jnp.sum(e, axis=1, keepdims=True)                         # (B, out_pad)

    # ---- single lane-dense merged store: [ x_sum_pad | softmax_pad ] ---------
    out_ref[...] = jnp.concatenate([x_sum, out_sm], axis=1)                # (B, 256)


# -----------------------------------------------------------------------------
# Wrapper
# -----------------------------------------------------------------------------
def attention_forward(x, slab, static):
    """One gridless pallas_call: 2 input DMAs (x + slab), 1 lane-dense output."""
    B = static["B"]
    H = static["H"]
    O = static["O"]
    xs_pad = static["xs_pad"]
    out_pad = static["out_pad"]

    vmem = pl.BlockSpec(memory_space=pltpu.MemorySpace.VMEM)
    merged = pl.pallas_call(
        functools.partial(attention_kernel, static=static),
        out_shape=jax.ShapeDtypeStruct((B, xs_pad + out_pad), jnp.float32),
        in_specs=[vmem, vmem],
        out_specs=vmem,
    )(x, slab)
    return merged[:, :H], merged[:, xs_pad:xs_pad + O]


# -----------------------------------------------------------------------------
# Parameters
# -----------------------------------------------------------------------------
def init_params(key, in_channel, hid_channel, out_channel):
    """Raw torch-shaped parameters (Linear weights stored pre-transposed (in, out))."""
    ks = jax.random.split(key, 7)
    scale = 0.1
    return {
        # 4 stand-in feature extractors (MLP / LSTM / CNN / LSTMFCN)
        "wf": scale * jax.random.normal(ks[0], (4, in_channel, hid_channel), jnp.float32),
        "bf": scale * jax.random.normal(ks[1], (4, hid_channel), jnp.float32),
        # w_q, w_k, w_v
        "wqkv": scale * jax.random.normal(ks[2], (3, hid_channel, hid_channel), jnp.float32),
        "bqkv": scale * jax.random.normal(ks[3], (3, hid_channel), jnp.float32),
        # fc
        "wfc": scale * jax.random.normal(ks[4], (hid_channel, out_channel), jnp.float32),
        "bfc": scale * jax.random.normal(ks[5], (1, out_channel), jnp.float32),
    }


def pack_params(raw, batch):
    """One-time packing of every weight / bias / structural constant into a
    single (rows, 128) f32 slab.  All blocks start on an 8-row boundary."""
    wf = np.asarray(raw["wf"], np.float32)        # (NF, C, H)
    bf = np.asarray(raw["bf"], np.float32)        # (NF, H)
    wqkv = np.asarray(raw["wqkv"], np.float32)    # (3, H, H)
    bqkv = np.asarray(raw["bqkv"], np.float32)    # (3, H)
    wfc = np.asarray(raw["wfc"], np.float32)      # (H, O)
    bfc = np.asarray(raw["bfc"], np.float32)      # (1, O)

    NF, C, H = wf.shape
    O = wfc.shape[1]
    B = batch
    R = B * NF

    xs_pad = _round_up(H, LANES)     # lane-padded x_sum block (128)
    out_pad = _round_up(O, LANES)    # lane-padded fc-softmax block (128)

    blocks = {}
    # row-repeat matrix: xa = P @ x, P[r, b] = (b == r // NF)
    P = np.zeros((R, B), np.float32)
    for r in range(R):
        P[r, r // NF] = 1.0
    blocks["P"] = P
    # lane-tiling matrix: xt = xa @ TileMat, TileMat[c, s*C + c] = 1
    TileMat = np.zeros((C, NF * C), np.float32)
    for s in range(NF):
        for c in range(C):
            TileMat[c, s * C + c] = 1.0
    blocks["TileMat"] = TileMat
    # block mask: row r keeps only lane segment (r % NF)
    BlockMask = np.zeros((R, NF * C), np.float32)
    for r in range(R):
        i = r % NF
        BlockMask[r, i * C:(i + 1) * C] = 1.0
    blocks["BlockMask"] = BlockMask
    # stacked feature-extractor weights / per-row biases
    blocks["WfStack"] = wf.reshape(NF * C, H)                 # row i*C+c = wf[i, c, :]
    blocks["BfRows"] = np.tile(bf, (B, 1))                    # row r = bf[r % NF]
    # q / k weights (natural H lanes), v weight padded to 128 output lanes
    blocks["Wq"] = wqkv[0]
    blocks["Wk"] = wqkv[1]
    WvPad = np.zeros((H, xs_pad), np.float32); WvPad[:, :H] = wqkv[2]
    blocks["WvPad"] = WvPad
    Bq = np.zeros((1, H), np.float32); Bq[0, :] = bqkv[0]
    Bk = np.zeros((1, H), np.float32); Bk[0, :] = bqkv[1]
    BvPad = np.zeros((1, xs_pad), np.float32); BvPad[0, :H] = bqkv[2]
    blocks["Bq"], blocks["Bk"], blocks["BvPad"] = Bq, Bk, BvPad
    # fc: rows padded to xs_pad (extra rows hit x_sum's zero lanes), lanes to 128
    WfcPad = np.zeros((xs_pad, out_pad), np.float32); WfcPad[:H, :O] = wfc
    blocks["WfcPad"] = WfcPad
    BfcPad = np.zeros((1, out_pad), np.float32); BfcPad[0, :O] = bfc[0]
    blocks["BfcPad"] = BfcPad

    # --- stack into one (rows, 128) slab, 8-row aligned per block -------------
    meta = {}
    slab_pieces = []
    row = 0
    for name, arr in blocks.items():
        r, w = arr.shape
        assert w <= LANES
        meta[name] = (row, r, w)
        padded = np.zeros((_round_up(r, 8), LANES), np.float32)
        padded[:r, :w] = arr
        slab_pieces.append(padded)
        row += padded.shape[0]
    slab = np.concatenate(slab_pieces, axis=0)

    static = dict(B=B, C=C, H=H, NF=NF, O=O,
                  xs_pad=xs_pad, out_pad=out_pad, meta=meta)
    return jnp.asarray(slab), static


# -----------------------------------------------------------------------------
# Pure-JAX reference of the same math (stand-in feature extractors)
# -----------------------------------------------------------------------------
def reference_forward(x, raw):
    feats = [jnp.tanh(x @ raw["wf"][i] + raw["bf"][i]) for i in range(4)]
    z = jnp.stack(feats, axis=1)                                   # (B, 4, H)
    q = z @ raw["wqkv"][0] + raw["bqkv"][0]
    k = z @ raw["wqkv"][1] + raw["bqkv"][1]
    v = z @ raw["wqkv"][2] + raw["bqkv"][2]
    s = jnp.einsum("bik,bjk->bij", q, k)
    score = jax.nn.softmax(s, axis=0)            # torch legacy nn.Softmax() dim=0 (3-D)
    x_sum = jnp.sum(jnp.einsum("bij,bjh->bih", score, v), axis=1)
    out = jax.nn.softmax(x_sum @ raw["wfc"] + raw["bfc"], axis=1)  # legacy dim=1 (2-D)
    return x_sum, out


if __name__ == "__main__":
    B, in_channel, hid_channel, out_channel = 2, 16, 32, 8

    key = jax.random.PRNGKey(0)
    kx, kp = jax.random.split(key)
    x = jax.random.normal(kx, (B, in_channel), jnp.float32)
    raw = init_params(kp, in_channel, hid_channel, out_channel)
    slab, static = pack_params(raw, batch=B)

    x_sum, out = attention_forward(x, slab, static)
    jax.block_until_ready((x_sum, out))

    assert x_sum.shape == (B, hid_channel)
    assert out.shape == (B, out_channel)
    # out rows are a softmax over dim=1 -> rows sum to 1
    assert jnp.allclose(jnp.sum(out, axis=1), jnp.ones((B,)), atol=1e-5)

    # check against the pure-JAX reference (exact division now; tolerance only
    # covers MXU-vs-XLA f32 matmul / transcendental differences)
    x_sum_ref, out_ref_ = reference_forward(x, raw)
    assert jnp.allclose(x_sum, x_sum_ref, rtol=1e-2, atol=1e-3)
    assert jnp.allclose(out, out_ref_, rtol=1e-2, atol=1e-3)

    print("KERNEL_OK")
</pallas_src>

<mosaic_0001>
module attributes {stable_mosaic.version = 11 : i64} {
  func.func @attention_kernel(%arg0: memref<2x16xf32, #tpu.memory_space<vmem>>, %arg1: memref<360x128xf32, #tpu.memory_space<vmem>>, %arg2: memref<2x256xf32, #tpu.memory_space<vmem>>) attributes {dimension_semantics = [], scalar_prefetch = 0 : i64, scratch_operands = 0 : i64, tpu.core_type = #tpu.core_type<tc>} {
    %c0 = arith.constant 0 : index
    %c0_0 = arith.constant 0 : index
    %0 = vector.load %arg0[%c0, %c0_0] : memref<2x16xf32, #tpu.memory_space<vmem>>, vector<2x16xf32>
    %c0_1 = arith.constant 0 : index
    %c0_2 = arith.constant 0 : index
    %1 = vector.load %arg1[%c0_1, %c0_2] : memref<360x128xf32, #tpu.memory_space<vmem>>, vector<8x2xf32>
    %cst = arith.constant dense<0.000000e+00> : vector<8x16xf32>
    %2 = tpu.matmul %1, %0, %cst {dimension_numbers = #tpu.dot_dimension_numbers<[1], [0], [0], [1], [0, 0, 1, 1], [], []>} : vector<8x2xf32>, vector<2x16xf32>, vector<8x16xf32> -> vector<8x16xf32>
    %c8 = arith.constant 8 : index
    %c0_3 = arith.constant 0 : index
    %3 = vector.load %arg1[%c8, %c0_3] : memref<360x128xf32, #tpu.memory_space<vmem>>, vector<16x64xf32>
    %cst_4 = arith.constant dense<0.000000e+00> : vector<8x64xf32>
    %4 = tpu.matmul %2, %3, %cst_4 {dimension_numbers = #tpu.dot_dimension_numbers<[1], [0], [0], [1], [0, 0, 1, 1], [], []>} : vector<8x16xf32>, vector<16x64xf32>, vector<8x64xf32> -> vector<8x64xf32>
    %c24 = arith.constant 24 : index
    %c0_5 = arith.constant 0 : index
    %5 = vector.load %arg1[%c24, %c0_5] : memref<360x128xf32, #tpu.memory_space<vmem>>, vector<8x64xf32>
    %6 = arith.mulf %4, %5 : vector<8x64xf32>
    %c32 = arith.constant 32 : index
    %c0_6 = arith.constant 0 : index
    %7 = vector.load %arg1[%c32, %c0_6] : memref<360x128xf32, #tpu.memory_space<vmem>>, vector<64x32xf32>
    %cst_7 = arith.constant dense<0.000000e+00> : vector<8x32xf32>
    %8 = tpu.matmul %6, %7, %cst_7 {dimension_numbers = #tpu.dot_dimension_numbers<[1], [0], [0], [1], [0, 0, 1, 1], [], []>} : vector<8x64xf32>, vector<64x32xf32>, vector<8x32xf32> -> vector<8x32xf32>
    %c96 = arith.constant 96 : index
    %c0_8 = arith.constant 0 : index
    %9 = vector.load %arg1[%c96, %c0_8] : memref<360x128xf32, #tpu.memory_space<vmem>>, vector<8x32xf32>
    %10 = arith.addf %8, %9 : vector<8x32xf32>
    %11 = math.tanh %10 : vector<8x32xf32>
    %c104 = arith.constant 104 : index
    %c0_9 = arith.constant 0 : index
    %12 = vector.load %arg1[%c104, %c0_9] : memref<360x128xf32, #tpu.memory_space<vmem>>, vector<32x32xf32>
    %cst_10 = arith.constant dense<0.000000e+00> : vector<8x32xf32>
    %13 = tpu.matmul %11, %12, %cst_10 {dimension_numbers = #tpu.dot_dimension_numbers<[1], [0], [0], [1], [0, 0, 1, 1], [], []>} : vector<8x32xf32>, vector<32x32xf32>, vector<8x32xf32> -> vector<8x32xf32>
    %c200 = arith.constant 200 : index
    %c0_11 = arith.constant 0 : index
    %14 = vector.load %arg1[%c200, %c0_11] : memref<360x128xf32, #tpu.memory_space<vmem>>, vector<1x32xf32>
    %15 = vector.broadcast %14 : vector<1x32xf32> to vector<8x32xf32>
    %16 = arith.addf %13, %15 : vector<8x32xf32>
    %c136 = arith.constant 136 : index
    %c0_12 = arith.constant 0 : index
    %17 = vector.load %arg1[%c136, %c0_12] : memref<360x128xf32, #tpu.memory_space<vmem>>, vector<32x32xf32>
    %cst_13 = arith.constant dense<0.000000e+00> : vector<8x32xf32>
    %18 = tpu.matmul %11, %17, %cst_13 {dimension_numbers = #tpu.dot_dimension_numbers<[1], [0], [0], [1], [0, 0, 1, 1], [], []>} : vector<8x32xf32>, vector<32x32xf32>, vector<8x32xf32> -> vector<8x32xf32>
    %c208 = arith.constant 208 : index
    %c0_14 = arith.constant 0 : index
    %19 = vector.load %arg1[%c208, %c0_14] : memref<360x128xf32, #tpu.memory_space<vmem>>, vector<1x32xf32>
    %20 = vector.broadcast %19 : vector<1x32xf32> to vector<8x32xf32>
    %21 = arith.addf %18, %20 : vector<8x32xf32>
    %c168 = arith.constant 168 : index
    %c0_15 = arith.constant 0 : index
    %22 = vector.load %arg1[%c168, %c0_15] : memref<360x128xf32, #tpu.memory_space<vmem>>, vector<32x128xf32>
    %cst_16 = arith.constant dense<0.000000e+00> : vector<8x128xf32>
    %23 = tpu.matmul %11, %22, %cst_16 {dimension_numbers = #tpu.dot_dimension_numbers<[1], [0], [0], [1], [0, 0, 1, 1], [], []>} : vector<8x32xf32>, vector<32x128xf32>, vector<8x128xf32> -> vector<8x128xf32>
    %c216 = arith.constant 216 : index
    %c0_17 = arith.constant 0 : index
    %24 = vector.load %arg1[%c216, %c0_17] : memref<360x128xf32, #tpu.memory_space<vmem>>, vector<1x128xf32>
    %25 = vector.broadcast %24 : vector<1x128xf32> to vector<8x128xf32>
    %26 = arith.addf %23, %25 : vector<8x128xf32>
    %cst_18 = arith.constant dense<0.000000e+00> : vector<8x8xf32>
    %27 = tpu.matmul %16, %21, %cst_18 {dimension_numbers = #tpu.dot_dimension_numbers<[1], [1], [0], [0], [0, 0, 1, 0], [], []>} : vector<8x32xf32>, vector<8x32xf32>, vector<8x8xf32> -> vector<8x8xf32>
    %28 = vector.extract_strided_slice %27 {offsets = [0, 0], sizes = [4, 4], strides = [1, 1]} : vector<8x8xf32> to vector<4x4xf32>
    %29 = vector.extract_strided_slice %27 {offsets = [4, 4], sizes = [4, 4], strides = [1, 1]} : vector<8x8xf32> to vector<4x4xf32>
    %30 = arith.maximumf %28, %29 : vector<4x4xf32>
    %31 = arith.subf %28, %30 : vector<4x4xf32>
    %32 = math.exp %31 : vector<4x4xf32>
    %33 = arith.subf %29, %30 : vector<4x4xf32>
    %34 = math.exp %33 : vector<4x4xf32>
    %35 = arith.addf %32, %34 : vector<4x4xf32>
    %36 = arith.divf %32, %35 : vector<4x4xf32>
    %37 = arith.divf %34, %35 : vector<4x4xf32>
    %cst_19 = arith.constant dense<0.000000e+00> : vector<4xf32>
    %38 = vector.multi_reduction <add>, %36, %cst_19 [0] : vector<4x4xf32> to vector<4xf32>
    %39 = vector.shape_cast %38 : vector<4xf32> to vector<1x4xf32>
    %cst_20 = arith.constant dense<0.000000e+00> : vector<4xf32>
    %40 = vector.multi_reduction <add>, %37, %cst_20 [0] : vector<4x4xf32> to vector<4xf32>
    %41 = vector.shape_cast %40 : vector<4xf32> to vector<1x4xf32>
    %42 = tpu.concatenate %39, %41 in 1 : vector<1x4xf32>, vector<1x4xf32> -> vector<1x8xf32>
    %43 = tpu.iota {dimensions = array<i32: 0>} : vector<2x8xi32>
    %44 = tpu.iota {dimensions = array<i32: 1>} : vector<2x8xi32>
    %c4_i32 = arith.constant 4 : i32
    %45 = vector.broadcast %c4_i32 : i32 to vector<2x8xi32>
    %46 = arith.muli %43, %45 : vector<2x8xi32>
    %47 = arith.cmpi sge, %44, %46 : vector<2x8xi32>
    %c1_i32 = arith.constant 1 : i32
    %48 = vector.broadcast %c1_i32 : i32 to vector<2x8xi32>
    %49 = arith.addi %43, %48 : vector<2x8xi32>
    %c4_i32_21 = arith.constant 4 : i32
    %50 = vector.broadcast %c4_i32_21 : i32 to vector<2x8xi32>
    %51 = arith.muli %49, %50 : vector<2x8xi32>
    %52 = arith.cmpi slt, %44, %51 : vector<2x8xi32>
    %53 = arith.andi %47, %52 : vector<2x8xi1>
    %cst_22 = arith.constant 0.000000e+00 : f32
    %54 = vector.shape_cast %42 : vector<1x8xf32> to vector<1x8xf32>
    %55 = vector.broadcast %54 : vector<1x8xf32> to vector<2x8xf32>
    %56 = vector.broadcast %cst_22 : f32 to vector<2x8xf32>
    %57 = arith.select %53, %55, %56 : vector<2x8xi1>, vector<2x8xf32>
    %cst_23 = arith.constant dense<0.000000e+00> : vector<2x128xf32>
    %58 = tpu.matmul %57, %26, %cst_23 {dimension_numbers = #tpu.dot_dimension_numbers<[1], [0], [0], [1], [0, 0, 1, 1], [], []>} : vector<2x8xf32>, vector<8x128xf32>, vector<2x128xf32> -> vector<2x128xf32>
    %c224 = arith.constant 224 : index
    %c0_24 = arith.constant 0 : index
    %59 = vector.load %arg1[%c224, %c0_24] : memref<360x128xf32, #tpu.memory_space<vmem>>, vector<128x128xf32>
    %cst_25 = arith.constant dense<0.000000e+00> : vector<2x128xf32>
    %60 = tpu.matmul %58, %59, %cst_25 {dimension_numbers = #tpu.dot_dimension_numbers<[1], [0], [0], [1], [0, 0, 1, 1], [], []>} : vector<2x128xf32>, vector<128x128xf32>, vector<2x128xf32> -> vector<2x128xf32>
    %c352 = arith.constant 352 : index
    %c0_26 = arith.constant 0 : index
    %61 = vector.load %arg1[%c352, %c0_26] : memref<360x128xf32, #tpu.memory_space<vmem>>, vector<1x128xf32>
    %62 = vector.broadcast %61 : vector<1x128xf32> to vector<2x128xf32>
    %63 = arith.addf %60, %62 : vector<2x128xf32>
    %64 = tpu.iota {dimensions = array<i32: 1>} : vector<2x128xi32>
    %c8_i32 = arith.constant 8 : i32
    %65 = vector.broadcast %c8_i32 : i32 to vector<2x128xi32>
    %66 = arith.cmpi slt, %64, %65 : vector<2x128xi32>
    %cst_27 = arith.constant -1.000000e+30 : f32
    %67 = vector.broadcast %cst_27 : f32 to vector<2x128xf32>
    %68 = arith.select %66, %63, %67 : vector<2x128xi1>, vector<2x128xf32>
    %cst_28 = arith.constant dense<0xFF800000> : vector<2xf32>
    %69 = vector.multi_reduction <maximumf>, %68, %cst_28 [1] : vector<2x128xf32> to vector<2xf32>
    %70 = vector.shape_cast %69 : vector<2xf32> to vector<2x1xf32>
    %71 = vector.broadcast %70 : vector<2x1xf32> to vector<2x128xf32>
    %72 = arith.subf %63, %71 : vector<2x128xf32>
    %73 = math.exp %72 : vector<2x128xf32>
    %cst_29 = arith.constant 0.000000e+00 : f32
    %74 = vector.broadcast %cst_29 : f32 to vector<2x128xf32>
    %75 = arith.select %66, %73, %74 : vector<2x128xi1>, vector<2x128xf32>
    %cst_30 = arith.constant dense<0.000000e+00> : vector<2xf32>
    %76 = vector.multi_reduction <add>, %75, %cst_30 [1] : vector<2x128xf32> to vector<2xf32>
    %77 = vector.shape_cast %76 : vector<2xf32> to vector<2x1xf32>
    %78 = vector.broadcast %77 : vector<2x1xf32> to vector<2x128xf32>
    %79 = arith.divf %75, %78 : vector<2x128xf32>
    %80 = tpu.concatenate %58, %79 in 1 : vector<2x128xf32>, vector<2x128xf32> -> vector<2x256xf32>
    %c0_31 = arith.constant 0 : index
    %c0_32 = arith.constant 0 : index
    %81 = vector.load %arg2[%c0_31, %c0_32] : memref<2x256xf32, #tpu.memory_space<vmem>>, vector<2x256xf32>
    tpu.vector_store %arg2[%c0_31, %c0_32], %80 {strides = array<i32>} : memref<2x256xf32, #tpu.memory_space<vmem>>, vector<2x256xf32>,
    return
  }
}

</mosaic_0001>

<llo_original>
// kernel: tpu_custom_call.1
$region0: #{tpu_custom_call.1}
  #allocation0 [shape = 'u32[]', space=smem, size = 0x4, offset = 0x4, fixed_abs, tag = 'smem constant byte address 0x4 - core index']
  #allocation1 [shape = 'u32[144,128]{1,0:T(1,128)}', space=vmem, size = 0x12000, scoped, tag = 'internal scratch']
  %s0 = inlined_call_operand.hbm [shape: f32[2,16], index: 0, kind: input, shape index: {}]
  %s1 = inlined_call_operand.hbm [shape: f32[360,128], index: 1, kind: input, shape index: {}]
  %s2 = inlined_call_operand.hbm [shape: f32[2,256], index: 2, kind: output, shape index: {}]
  %s3 = sld [smem:[#allocation0]]
  $region26: #{tpu_custom_call.1} parent=0
    _
  %s5 = ssub.s32 1, %s3
  %s6 = scalar_select 0, %s5, %s3
  $region1: #{tpu_custom_call.1} parent=0
    #allocation2 [shape = 'u8[1024]{0}', space=vmem, size = 0x400, scoped, tag = 'input window, operand 0, single buffered']
    #allocation3 [shape = 's32[1]{0}', space=sflag, size = 0x4, scoped, tag = 'scoped memory for tpu_custom_call.1']
    #allocation4 [shape = 's32[1]{0}', space=sflag, size = 0x4, scoped, tag = 'scoped memory for tpu_custom_call.1']
    #allocation5 [shape = 'u8[184320]{0}', space=vmem, size = 0x2d000, scoped, tag = 'input window, operand 1, single buffered']
    #allocation6 [shape = 's32[1]{0}', space=sflag, size = 0x4, scoped, tag = 'scoped memory for tpu_custom_call.1']
    #allocation7 [shape = 'u8[2048]{0}', space=vmem, size = 0x800, scoped, tag = 'output window, operand 0, single buffered']
    %7 = vsyncpa [#allocation3], 0
    %8 = vsyncpa [#allocation6], 0
    %9 = vsyncpa [#allocation4], 0
    // Predicated region
    $region2: #{tpu_custom_call.1} parent=1 // pred_check
      _
    $region3: #{tpu_custom_call.1} parent=1 // pred_check_branch
      %11 = sbr.rel (0) target = $region5
    $region4: #{tpu_custom_call.1} parent=1 // pred_region
      %s13 = ssub.s32 32, 32
      %14 = vsyncadd [#allocation3], %s13
      %s16 = sshll.u32 [#allocation2], 4
      %s17 = int_to_ptr.vmem [resolvable:$true] %s16
      %19 = dma.hbm_to_vmem [thread:$0]  %s0, 32, %s17, [#allocation3]
    $region5: #{tpu_custom_call.1} parent=1 // pred_fallthru
      _
    // Predicated region
    $region6: #{tpu_custom_call.1} parent=1 // pred_check
      _
    $region7: #{tpu_custom_call.1} parent=1 // pred_check_branch
      %21 = sbr.rel (0) target = $region9
    $region8: #{tpu_custom_call.1} parent=1 // pred_region
      %s23 = ssub.s32 5760, 5760
      %24 = vsyncadd [#allocation6], %s23
      %s25 = sshll.u32 [#allocation5], 4
      %s26 = int_to_ptr.vmem [resolvable:$true] %s25
      %31 = dma.hbm_to_vmem [thread:$0]  %s1, 5760, %s26, [#allocation6], 128, 128, 8
    $region9: #{tpu_custom_call.1} parent=1 // pred_fallthru
      _
    // Predicated region
    $region10: #{tpu_custom_call.1} parent=1 // pred_check
      _
    $region11: #{tpu_custom_call.1} parent=1 // pred_check_branch
      %33 = sbr.rel (0) target = $region13
    $region12: #{tpu_custom_call.1} parent=1 // pred_region
      %34 = dma.done [#allocation3], 32
    $region13: #{tpu_custom_call.1} parent=1 // pred_fallthru
      _
    // Predicated region
    $region14: #{tpu_custom_call.1} parent=1 // pred_check
      _
    $region15: #{tpu_custom_call.1} parent=1 // pred_check_branch
      %36 = sbr.rel (0) target = $region17
    $region16: #{tpu_custom_call.1} parent=1 // pred_region
      %37 = dma.done [#allocation6], 5760
    $region17: #{tpu_custom_call.1} parent=1 // pred_fallthru
      _
    %v38 = vld [vmem:[#allocation2] sm:$0x3]
    %v39 = vld [vmem:[#allocation5] sm:$0xff]
    %vm40 = vcmask 15360
    %v42 = vsel %vm40, %v39, 0
    %vm44 = vcmask 1041408
    %v46 = vsel %vm44, %v38, 0
    %48 = vmatprep.subr.mxu0 0.0
    %49 = vmatpush1.msra.mxu0 %v46
    %50 = vmatprep.subr.mxu0 0.0
    %51 = vmatpush1.msra.mxu0 0.0
    %52 = vmatprep.subr.mxu0 0.0
    %53 = vmatpush1.msra.mxu0 0.0
    %54 = vmatprep.subr.mxu0 0.0
    %55 = vmatpush1.msra.mxu0 0.0
    %56 = vmatprep.subr.mxu0 0.0
    %57 = vmatpush1.msra.mxu0 0.0
    %58 = vmatprep.subr.mxu0 0.0
    %59 = vmatpush1.msra.mxu0 0.0
    %60 = vmatprep.subr.mxu0 0.0
    %61 = vmatpush1.msra.mxu0 0.0
    %62 = vmatprep.subr.mxu0 0.0
    %63 = vmatpush1.msra.mxu0 0.0
    %64 = vmatprep.subr.mxu0 0.0
    %65 = vmatpush1.msra.mxu0 0.0
    %66 = vmatprep.subr.mxu0 0.0
    %67 = vmatpush1.msra.mxu0 0.0
    %68 = vmatprep.subr.mxu0 0.0
    %69 = vmatpush1.msra.mxu0 0.0
    %70 = vmatprep.subr.mxu0 0.0
    %71 = vmatpush1.msra.mxu0 0.0
    %72 = vmatprep.subr.mxu0 0.0
    %73 = vmatpush1.msra.mxu0 0.0
    %74 = vmatprep.subr.mxu0 0.0
    %75 = vmatpush1.msra.mxu0 0.0
    %76 = vmatprep.subr.mxu0 0.0
    %77 = vmatpush1.msra.mxu0 0.0
    %78 = vmatprep.subr.mxu0 0.0
    %79 = vmatpush1.msra.mxu0 0.0
    %80 = vmatprep.subr.mxu0 0.0
    %81 = vmatpush1.msra.mxu0 0.0
    %82 = vmatprep.subr.mxu0 0.0
    %83 = vmatpush1.msra.mxu0 0.0
    %84 = vmatprep.subr.mxu0 0.0
    %85 = vmatpush1.msra.mxu0 0.0
    %86 = vmatprep.subr.mxu0 0.0
    %87 = vmatpush1.msra.mxu0 0.0
    %88 = vmatprep.subr.mxu0 0.0
    %89 = vmatpush1.msra.mxu0 0.0
    %90 = vmatprep.subr.mxu0 0.0
    %91 = vmatpush1.msra.mxu0 0.0
    %92 = vmatprep.subr.mxu0 0.0
    %93 = vmatpush1.msra.mxu0 0.0
    %94 = vmatprep.subr.mxu0 0.0
    %95 = vmatpush1.msra.mxu0 0.0
    %96 = vmatprep.subr.mxu0 0.0
    %97 = vmatpush1.msra.mxu0 0.0
    %98 = vmatprep.subr.mxu0 0.0
    %99 = vmatpush1.msra.mxu0 0.0
    %100 = vmatprep.subr.mxu0 0.0
    %101 = vmatpush1.msra.mxu0 0.0
    %102 = vmatprep.subr.mxu0 0.0
    %103 = vmatpush1.msra.mxu0 0.0
    %104 = vmatprep.subr.mxu0 0.0
    %105 = vmatpush1.msra.mxu0 0.0
    %106 = vmatprep.subr.mxu0 0.0
    %107 = vmatpush1.msra.mxu0 0.0
    %108 = vmatprep.subr.mxu0 0.0
    %109 = vmatpush1.msra.mxu0 0.0
    %110 = vmatprep.subr.mxu0 0.0
    %111 = vmatpush1.msra.mxu0 0.0
    %112 = vmatprep.mubr.f32.mxu0 0.0
    %113 = vmatmul.mubr.f32.gmra.mrb[0].mxu0 %v42
    %v114 = vpop.f32.mrb[0].mxu0
    %v115 = vadd.f32 0.0, %v114
    %v116 = vpop.f32.mrb[0].mxu0
    %117 = vdwg.mxu0
    %v118 = vld [vmem:[#allocation5 + $0x8] sm:$0xff]
    %v119 = vld [vmem:[#allocation5 + $0x10] sm:$0xff]
    %vm120 = vcmask 130048
    %v122 = vsel %vm120, %v115, 0
    %124 = vmatprep.subr.mxu0 0.0
    %125 = vmatpush1.msra.mxu0 %v118
    %126 = vmatprep.subr.mxu0 0.0
    %127 = vmatpush1.msra.mxu0 %v119
    %128 = vmatprep.subr.mxu0 0.0
    %129 = vmatpush1.msra.mxu0 0.0
    %130 = vmatprep.subr.mxu0 0.0
    %131 = vmatpush1.msra.mxu0 0.0
    %132 = vmatprep.subr.mxu0 0.0
    %133 = vmatpush1.msra.mxu0 0.0
    %134 = vmatprep.subr.mxu0 0.0
    %135 = vmatpush1.msra.mxu0 0.0
    %136 = vmatprep.subr.mxu0 0.0
    %137 = vmatpush1.msra.mxu0 0.0
    %138 = vmatprep.subr.mxu0 0.0
    %139 = vmatpush1.msra.mxu0 0.0
    %140 = vmatprep.subr.mxu0 0.0
    %141 = vmatpush1.msra.mxu0 0.0
    %142 = vmatprep.subr.mxu0 0.0
    %143 = vmatpush1.msra.mxu0 0.0
    %144 = vmatprep.subr.mxu0 0.0
    %145 = vmatpush1.msra.mxu0 0.0
    %146 = vmatprep.subr.mxu0 0.0
    %147 = vmatpush1.msra.mxu0 0.0
    %148 = vmatprep.subr.mxu0 0.0
    %149 = vmatpush1.msra.mxu0 0.0
    %150 = vmatprep.subr.mxu0 0.0
    %151 = vmatpush1.msra.mxu0 0.0
    %152 = vmatprep.subr.mxu0 0.0
    %153 = vmatpush1.msra.mxu0 0.0
    %154 = vmatprep.subr.mxu0 0.0
    %155 = vmatpush1.msra.mxu0 0.0
    %156 = vmatprep.subr.mxu0 0.0
    %157 = vmatpush1.msra.mxu0 0.0
    %158 = vmatprep.subr.mxu0 0.0
    %159 = vmatpush1.msra.mxu0 0.0
    %160 = vmatprep.subr.mxu0 0.0
    %161 = vmatpush1.msra.mxu0 0.0
    %162 = vmatprep.subr.mxu0 0.0
    %163 = vmatpush1.msra.mxu0 0.0
    %164 = vmatprep.subr.mxu0 0.0
    %165 = vmatpush1.msra.mxu0 0.0
    %166 = vmatprep.subr.mxu0 0.0
    %167 = vmatpush1.msra.mxu0 0.0
    %168 = vmatprep.subr.mxu0 0.0
    %169 = vmatpush1.msra.mxu0 0.0
    %170 = vmatprep.subr.mxu0 0.0
    %171 = vmatpush1.msra.mxu0 0.0
    %172 = vmatprep.subr.mxu0 0.0
    %173 = vmatpush1.msra.mxu0 0.0
    %174 = vmatprep.subr.mxu0 0.0
    %175 = vmatpush1.msra.mxu0 0.0
    %176 = vmatprep.subr.mxu0 0.0
    %177 = vmatpush1.msra.mxu0 0.0
    %178 = vmatprep.subr.mxu0 0.0
    %179 = vmatpush1.msra.mxu0 0.0
    %180 = vmatprep.subr.mxu0 0.0
    %181 = vmatpush1.msra.mxu0 0.0
    %182 = vmatprep.subr.mxu0 0.0
    %183 = vmatpush1.msra.mxu0 0.0
    %184 = vmatprep.subr.mxu0 0.0
    %185 = vmatpush1.msra.mxu0 0.0
    %186 = vmatprep.subr.mxu0 0.0
    %187 = vmatpush1.msra.mxu0 0.0
    %188 = vmatprep.mubr.f32.mxu0 0.0
    %189 = vmatmul.mubr.f32.gmra.mrb[0].mxu0 %v122
    %v190 = vpop.f32.mrb[0].mxu0
    %v191 = vadd.f32 0.0, %v190
    %v192 = vpop.f32.mrb[0].mxu0
    %193 = vdwg.mxu0
    %v194 = vld [vmem:[#allocation5 + $0x18] sm:$0xff]
    %v195 = vmul.f32 %v191, %v194
    %v196 = vld [vmem:[#allocation5 + $0x20] sm:$0xff]
    %v197 = vld [vmem:[#allocation5 + $0x28] sm:$0xff]
    %v198 = vld [vmem:[#allocation5 + $0x30] sm:$0xff]
    %v199 = vld [vmem:[#allocation5 + $0x38] sm:$0xff]
    %v200 = vld [vmem:[#allocation5 + $0x40] sm:$0xff]
    %v201 = vld [vmem:[#allocation5 + $0x48] sm:$0xff]
    %v202 = vld [vmem:[#allocation5 + $0x50] sm:$0xff]
    %v203 = vld [vmem:[#allocation5 + $0x58] sm:$0xff]
    %v204 = vld [vmem:[#allocation5 + $0x60] sm:$0xff]
    %vm205 = vcmask 523264
    %v207 = vsel %vm205, %v195, 0
    %209 = vmatprep.subr.mxu0 0.0
    %210 = vmatpush1.msra.mxu0 %v196
    %211 = vmatprep.subr.mxu0 0.0
    %212 = vmatpush1.msra.mxu0 %v197
    %213 = vmatprep.subr.mxu0 0.0
    %214 = vmatpush1.msra.mxu0 %v198
    %215 = vmatprep.subr.mxu0 0.0
    %216 = vmatpush1.msra.mxu0 %v199
    %217 = vmatprep.subr.mxu0 0.0
    %218 = vmatpush1.msra.mxu0 %v200
    %219 = vmatprep.subr.mxu0 0.0
    %220 = vmatpush1.msra.mxu0 %v201
    %221 = vmatprep.subr.mxu0 0.0
    %222 = vmatpush1.msra.mxu0 %v202
    %223 = vmatprep.subr.mxu0 0.0
    %224 = vmatpush1.msra.mxu0 %v203
    %225 = vmatprep.subr.mxu0 0.0
    %226 = vmatpush1.msra.mxu0 0.0
    %227 = vmatprep.subr.mxu0 0.0
    %228 = vmatpush1.msra.mxu0 0.0
    %229 = vmatprep.subr.mxu0 0.0
    %230 = vmatpush1.msra.mxu0 0.0
    %231 = vmatprep.subr.mxu0 0.0
    %232 = vmatpush1.msra.mxu0 0.0
    %233 = vmatprep.subr.mxu0 0.0
    %234 = vmatpush1.msra.mxu0 0.0
    %235 = vmatprep.subr.mxu0 0.0
    %236 = vmatpush1.msra.mxu0 0.0
    %237 = vmatprep.subr.mxu0 0.0
    %238 = vmatpush1.msra.mxu0 0.0
    %239 = vmatprep.subr.mxu0 0.0
    %240 = vmatpush1.msra.mxu0 0.0
    %241 = vmatprep.subr.mxu0 0.0
    %242 = vmatpush1.msra.mxu0 0.0
    %243 = vmatprep.subr.mxu0 0.0
    %244 = vmatpush1.msra.mxu0 0.0
    %245 = vmatprep.subr.mxu0 0.0
    %246 = vmatpush1.msra.mxu0 0.0
    %247 = vmatprep.subr.mxu0 0.0
    %248 = vmatpush1.msra.mxu0 0.0
    %249 = vmatprep.subr.mxu0 0.0
    %250 = vmatpush1.msra.mxu0 0.0
    %251 = vmatprep.subr.mxu0 0.0
    %252 = vmatpush1.msra.mxu0 0.0
    %253 = vmatprep.subr.mxu0 0.0
    %254 = vmatpush1.msra.mxu0 0.0
    %255 = vmatprep.subr.mxu0 0.0
    %256 = vmatpush1.msra.mxu0 0.0
    %257 = vmatprep.subr.mxu0 0.0
    %258 = vmatpush1.msra.mxu0 0.0
    %259 = vmatprep.subr.mxu0 0.0
    %260 = vmatpush1.msra.mxu0 0.0
    %261 = vmatprep.subr.mxu0 0.0
    %262 = vmatpush1.msra.mxu0 0.0
    %263 = vmatprep.subr.mxu0 0.0
    %264 = vmatpush1.msra.mxu0 0.0
    %265 = vmatprep.subr.mxu0 0.0
    %266 = vmatpush1.msra.mxu0 0.0
    %267 = vmatprep.subr.mxu0 0.0
    %268 = vmatpush1.msra.mxu0 0.0
    %269 = vmatprep.subr.mxu0 0.0
    %270 = vmatpush1.msra.mxu0 0.0
    %271 = vmatprep.subr.mxu0 0.0
    %272 = vmatpush1.msra.mxu0 0.0
    %273 = vmatprep.mubr.f32.mxu0 0.0
    %274 = vmatmul.mubr.f32.gmra.mrb[0].mxu0 %v207
    %v275 = vpop.f32.mrb[0].mxu0
    %v276 = vadd.f32 %v204, %v275
    %v277 = vpop.f32.mrb[0].mxu0
    %278 = vdwg.mxu0
    %v279 = vtanh.pop %v276
    %v280 = vld [vmem:[#allocation5 + $0x68] sm:$0xff]
    %v281 = vld [vmem:[#allocation5 + $0x70] sm:$0xff]
    %v282 = vld [vmem:[#allocation5 + $0x78] sm:$0xff]
    %v283 = vld [vmem:[#allocation5 + $0x80] sm:$0xff]
    %v284 = vld [vmem:[#allocation5 + $0xc8] sm:$0x1]
    %v285 = vlaneseq
    %v286 = vshrl.u32 %v285, 7
    %v287 = vsub.s32 0, %v286
    %v288 = vrot.slane %v284, %v287
    %vm289 = vcmask 261120
    %v291 = vsel %vm289, %v279, 0
    %293 = vmatprep.subr.mxu0 0.0
    %294 = vmatpush1.msra.mxu0 %v280
    %295 = vmatprep.subr.mxu0 0.0
    %296 = vmatpush1.msra.mxu0 %v281
    %297 = vmatprep.subr.mxu0 0.0
    %298 = vmatpush1.msra.mxu0 %v282
    %299 = vmatprep.subr.mxu0 0.0
    %300 = vmatpush1.msra.mxu0 %v283
    %301 = vmatprep.subr.mxu0 0.0
    %302 = vmatpush1.msra.mxu0 0.0
    %303 = vmatprep.subr.mxu0 0.0
    %304 = vmatpush1.msra.mxu0 0.0
    %305 = vmatprep.subr.mxu0 0.0
    %306 = vmatpush1.msra.mxu0 0.0
    %307 = vmatprep.subr.mxu0 0.0
    %308 = vmatpush1.msra.mxu0 0.0
    %309 = vmatprep.subr.mxu0 0.0
    %310 = vmatpush1.msra.mxu0 0.0
    %311 = vmatprep.subr.mxu0 0.0
    %312 = vmatpush1.msra.mxu0 0.0
    %313 = vmatprep.subr.mxu0 0.0
    %314 = vmatpush1.msra.mxu0 0.0
    %315 = vmatprep.subr.mxu0 0.0
    %316 = vmatpush1.msra.mxu0 0.0
    %317 = vmatprep.subr.mxu0 0.0
    %318 = vmatpush1.msra.mxu0 0.0
    %319 = vmatprep.subr.mxu0 0.0
    %320 = vmatpush1.msra.mxu0 0.0
    %321 = vmatprep.subr.mxu0 0.0
    %322 = vmatpush1.msra.mxu0 0.0
    %323 = vmatprep.subr.mxu0 0.0
    %324 = vmatpush1.msra.mxu0 0.0
    %325 = vmatprep.subr.mxu0 0.0
    %326 = vmatpush1.msra.mxu0 0.0
    %327 = vmatprep.subr.mxu0 0.0
    %328 = vmatpush1.msra.mxu0 0.0
    %329 = vmatprep.subr.mxu0 0.0
    %330 = vmatpush1.msra.mxu0 0.0
    %331 = vmatprep.subr.mxu0 0.0
    %332 = vmatpush1.msra.mxu0 0.0
    %333 = vmatprep.subr.mxu0 0.0
    %334 = vmatpush1.msra.mxu0 0.0
    %335 = vmatprep.subr.mxu0 0.0
    %336 = vmatpush1.msra.mxu0 0.0
    %337 = vmatprep.subr.mxu0 0.0
    %338 = vmatpush1.msra.mxu0 0.0
    %339 = vmatprep.subr.mxu0 0.0
    %340 = vmatpush1.msra.mxu0 0.0
    %341 = vmatprep.subr.mxu0 0.0
    %342 = vmatpush1.msra.mxu0 0.0
    %343 = vmatprep.subr.mxu0 0.0
    %344 = vmatpush1.msra.mxu0 0.0
    %345 = vmatprep.subr.mxu0 0.0
    %346 = vmatpush1.msra.mxu0 0.0
    %347 = vmatprep.subr.mxu0 0.0
    %348 = vmatpush1.msra.mxu0 0.0
    %349 = vmatprep.subr.mxu0 0.0
    %350 = vmatpush1.msra.mxu0 0.0
    %351 = vmatprep.subr.mxu0 0.0
    %352 = vmatpush1.msra.mxu0 0.0
    %353 = vmatprep.subr.mxu0 0.0
    %354 = vmatpush1.msra.mxu0 0.0
    %355 = vmatprep.subr.mxu0 0.0
    %356 = vmatpush1.msra.mxu0 0.0
    %357 = vmatprep.mubr.f32.mxu0 0.0
    %358 = vmatmul.mubr.f32.gmra.mrb[0].mxu0 %v291
    %v359 = vpop.f32.mrb[0].mxu0
    %v360 = vadd.f32 %v288, %v359
    %v361 = vpop.f32.mrb[0].mxu0
    %362 = vdwg.mxu0
    %v363 = vld [vmem:[#allocation5 + $0x88] sm:$0xff]
    %v364 = vld [vmem:[#allocation5 + $0x90] sm:$0xff]
    %v365 = vld [vmem:[#allocation5 + $0x98] sm:$0xff]
    %v366 = vld [vmem:[#allocation5 + $0xa0] sm:$0xff]
    %v367 = vld [vmem:[#allocation5 + $0xd0] sm:$0x1]
    %v368 = vlaneseq
    %v369 = vshrl.u32 %v368, 7
    %v370 = vsub.s32 0, %v369
    %v371 = vrot.slane %v367, %v370
    %372 = vmatprep.subr.mxu0 0.0
    %373 = vmatpush1.msra.mxu0 %v363
    %374 = vmatprep.subr.mxu0 0.0
    %375 = vmatpush1.msra.mxu0 %v364
    %376 = vmatprep.subr.mxu0 0.0
    %377 = vmatpush1.msra.mxu0 %v365
    %378 = vmatprep.subr.mxu0 0.0
    %379 = vmatpush1.msra.mxu0 %v366
    %380 = vmatprep.subr.mxu0 0.0
    %381 = vmatpush1.msra.mxu0 0.0
    %382 = vmatprep.subr.mxu0 0.0
    %383 = vmatpush1.msra.mxu0 0.0
    %384 = vmatprep.subr.mxu0 0.0
    %385 = vmatpush1.msra.mxu0 0.0
    %386 = vmatprep.subr.mxu0 0.0
    %387 = vmatpush1.msra.mxu0 0.0
    %388 = vmatprep.subr.mxu0 0.0
    %389 = vmatpush1.msra.mxu0 0.0
    %390 = vmatprep.subr.mxu0 0.0
    %391 = vmatpush1.msra.mxu0 0.0
    %392 = vmatprep.subr.mxu0 0.0
    %393 = vmatpush1.msra.mxu0 0.0
    %394 = vmatprep.subr.mxu0 0.0
    %395 = vmatpush1.msra.mxu0 0.0
    %396 = vmatprep.subr.mxu0 0.0
    %397 = vmatpush1.msra.mxu0 0.0
    %398 = vmatprep.subr.mxu0 0.0
    %399 = vmatpush1.msra.mxu0 0.0
    %400 = vmatprep.subr.mxu0 0.0
    %401 = vmatpush1.msra.mxu0 0.0
    %402 = vmatprep.subr.mxu0 0.0
    %403 = vmatpush1.msra.mxu0 0.0
    %404 = vmatprep.subr.mxu0 0.0
    %405 = vmatpush1.msra.mxu0 0.0
    %406 = vmatprep.subr.mxu0 0.0
    %407 = vmatpush1.msra.mxu0 0.0
    %408 = vmatprep.subr.mxu0 0.0
    %409 = vmatpush1.msra.mxu0 0.0
    %410 = vmatprep.subr.mxu0 0.0
    %411 = vmatpush1.msra.mxu0 0.0
    %412 = vmatprep.subr.mxu0 0.0
    %413 = vmatpush1.msra.mxu0 0.0
    %414 = vmatprep.subr.mxu0 0.0
    %415 = vmatpush1.msra.mxu0 0.0
    %416 = vmatprep.subr.mxu0 0.0
    %417 = vmatpush1.msra.mxu0 0.0
    %418 = vmatprep.subr.mxu0 0.0
    %419 = vmatpush1.msra.mxu0 0.0
    %420 = vmatprep.subr.mxu0 0.0
    %421 = vmatpush1.msra.mxu0 0.0
    %422 = vmatprep.subr.mxu0 0.0
    %423 = vmatpush1.msra.mxu0 0.0
    %424 = vmatprep.subr.mxu0 0.0
    %425 = vmatpush1.msra.mxu0 0.0
    %426 = vmatprep.subr.mxu0 0.0
    %427 = vmatpush1.msra.mxu0 0.0
    %428 = vmatprep.subr.mxu0 0.0
    %429 = vmatpush1.msra.mxu0 0.0
    %430 = vmatprep.subr.mxu0 0.0
    %431 = vmatpush1.msra.mxu0 0.0
    %432 = vmatprep.subr.mxu0 0.0
    %433 = vmatpush1.msra.mxu0 0.0
    %434 = vmatprep.subr.mxu0 0.0
    %435 = vmatpush1.msra.mxu0 0.0
    %436 = vmatprep.mubr.f32.mxu0 0.0
    %437 = vmatmul.mubr.f32.gmra.mrb[0].mxu0 %v291
    %v438 = vpop.f32.mrb[0].mxu0
    %v439 = vadd.f32 %v371, %v438
    %v440 = vpop.f32.mrb[0].mxu0
    %441 = vdwg.mxu0
    %v442 = vld [vmem:[#allocation5 + $0xa8] sm:$0xff]
    %v443 = vld [vmem:[#allocation5 + $0xb0] sm:$0xff]
    %v444 = vld [vmem:[#allocation5 + $0xb8] sm:$0xff]
    %v445 = vld [vmem:[#allocation5 + $0xc0] sm:$0xff]
    %v446 = vld [vmem:[#allocation5 + $0xd8] sm:$0x1]
    %v447 = vlaneseq
    %v448 = vshrl.u32 %v447, 7
    %v449 = vsub.s32 0, %v448
    %v450 = vrot.slane %v446, %v449
    %451 = vmatprep.subr.mxu0 0.0
    %452 = vmatpush1.msra.mxu0 %v442
    %453 = vmatprep.subr.mxu0 0.0
    %454 = vmatpush1.msra.mxu0 %v443
    %455 = vmatprep.subr.mxu0 0.0
    %456 = vmatpush1.msra.mxu0 %v444
    %457 = vmatprep.subr.mxu0 0.0
    %458 = vmatpush1.msra.mxu0 %v445
    %459 = vmatprep.subr.mxu0 0.0
    %460 = vmatpush1.msra.mxu0 0.0
    %461 = vmatprep.subr.mxu0 0.0
    %462 = vmatpush1.msra.mxu0 0.0
    %463 = vmatprep.subr.mxu0 0.0
    %464 = vmatpush1.msra.mxu0 0.0
    %465 = vmatprep.subr.mxu0 0.0
    %466 = vmatpush1.msra.mxu0 0.0
    %467 = vmatprep.subr.mxu0 0.0
    %468 = vmatpush1.msra.mxu0 0.0
    %469 = vmatprep.subr.mxu0 0.0
    %470 = vmatpush1.msra.mxu0 0.0
    %471 = vmatprep.subr.mxu0 0.0
    %472 = vmatpush1.msra.mxu0 0.0
    %473 = vmatprep.subr.mxu0 0.0
    %474 = vmatpush1.msra.mxu0 0.0
    %475 = vmatprep.subr.mxu0 0.0
    %476 = vmatpush1.msra.mxu0 0.0
    %477 = vmatprep.subr.mxu0 0.0
    %478 = vmatpush1.msra.mxu0 0.0
    %479 = vmatprep.subr.mxu0 0.0
    %480 = vmatpush1.msra.mxu0 0.0
    %481 = vmatprep.subr.mxu0 0.0
    %482 = vmatpush1.msra.mxu0 0.0
    %483 = vmatprep.subr.mxu0 0.0
    %484 = vmatpush1.msra.mxu0 0.0
    %485 = vmatprep.subr.mxu0 0.0
    %486 = vmatpush1.msra.mxu0 0.0
    %487 = vmatprep.subr.mxu0 0.0
    %488 = vmatpush1.msra.mxu0 0.0
    %489 = vmatprep.subr.mxu0 0.0
    %490 = vmatpush1.msra.mxu0 0.0
    %491 = vmatprep.subr.mxu0 0.0
    %492 = vmatpush1.msra.mxu0 0.0
    %493 = vmatprep.subr.mxu0 0.0
    %494 = vmatpush1.msra.mxu0 0.0
    %495 = vmatprep.subr.mxu0 0.0
    %496 = vmatpush1.msra.mxu0 0.0
    %497 = vmatprep.subr.mxu0 0.0
    %498 = vmatpush1.msra.mxu0 0.0
    %499 = vmatprep.subr.mxu0 0.0
    %500 = vmatpush1.msra.mxu0 0.0
    %501 = vmatprep.subr.mxu0 0.0
    %502 = vmatpush1.msra.mxu0 0.0
    %503 = vmatprep.subr.mxu0 0.0
    %504 = vmatpush1.msra.mxu0 0.0
    %505 = vmatprep.subr.mxu0 0.0
    %506 = vmatpush1.msra.mxu0 0.0
    %507 = vmatprep.subr.mxu0 0.0
    %508 = vmatpush1.msra.mxu0 0.0
    %509 = vmatprep.subr.mxu0 0.0
    %510 = vmatpush1.msra.mxu0 0.0
    %511 = vmatprep.subr.mxu0 0.0
    %512 = vmatpush1.msra.mxu0 0.0
    %513 = vmatprep.subr.mxu0 0.0
    %514 = vmatpush1.msra.mxu0 0.0
    %515 = vmatprep.mubr.f32.mxu0 0.0
    %516 = vmatmul.mubr.f32.gmra.mrb[0].mxu0 %v291
    %v517 = vpop.f32.mrb[0].mxu0
    %v518 = vadd.f32 %v450, %v517
    %v519 = vpop.f32.mrb[0].mxu0
    %520 = vdwg.mxu0
    %v522 = vsel %vm289, %v360, 0
    %v525 = vsel %vm289, %v439, 0
    %527 = vmatprep.subr.mxu0 0.0
    %528 = vmatpush1.xpose.msra.mxu0 %v525
    %529 = vmatprep.subr.mxu0 0.0
    %530 = vmatpush1.xpose.msra.mxu0 0.0
    %531 = vmatprep.subr.mxu0 0.0
    %532 = vmatpush1.xpose.msra.mxu0 0.0
    %533 = vmatprep.subr.mxu0 0.0
    %534 = vmatpush1.xpose.msra.mxu0 0.0
    %535 = vmatprep.subr.mxu0 0.0
    %536 = vmatpush1.xpose.msra.mxu0 0.0
    %537 = vmatprep.subr.mxu0 0.0
    %538 = vmatpush1.xpose.msra.mxu0 0.0
    %539 = vmatprep.subr.mxu0 0.0
    %540 = vmatpush1.xpose.msra.mxu0 0.0
    %541 = vmatprep.subr.mxu0 0.0
    %542 = vmatpush1.xpose.msra.mxu0 0.0
    %543 = vmatprep.subr.mxu0 0.0
    %544 = vmatpush1.xpose.msra.mxu0 0.0
    %545 = vmatprep.subr.mxu0 0.0
    %546 = vmatpush1.xpose.msra.mxu0 0.0
    %547 = vmatprep.subr.mxu0 0.0
    %548 = vmatpush1.xpose.msra.mxu0 0.0
    %549 = vmatprep.subr.mxu0 0.0
    %550 = vmatpush1.xpose.msra.mxu0 0.0
    %551 = vmatprep.subr.mxu0 0.0
    %552 = vmatpush1.xpose.msra.mxu0 0.0
    %553 = vmatprep.subr.mxu0 0.0
    %554 = vmatpush1.xpose.msra.mxu0 0.0
    %555 = vmatprep.subr.mxu0 0.0
    %556 = vmatpush1.xpose.msra.mxu0 0.0
    %557 = vmatprep.subr.mxu0 0.0
    %558 = vmatpush1.xpose.msra.mxu0 0.0
    %559 = vmatprep.subr.mxu0 0.0
    %560 = vmatpush1.xpose.msra.mxu0 0.0
    %561 = vmatprep.subr.mxu0 0.0
    %562 = vmatpush1.xpose.msra.mxu0 0.0
    %563 = vmatprep.subr.mxu0 0.0
    %564 = vmatpush1.xpose.msra.mxu0 0.0
    %565 = vmatprep.subr.mxu0 0.0
    %566 = vmatpush1.xpose.msra.mxu0 0.0
    %567 = vmatprep.subr.mxu0 0.0
    %568 = vmatpush1.xpose.msra.mxu0 0.0
    %569 = vmatprep.subr.mxu0 0.0
    %570 = vmatpush1.xpose.msra.mxu0 0.0
    %571 = vmatprep.subr.mxu0 0.0
    %572 = vmatpush1.xpose.msra.mxu0 0.0
    %573 = vmatprep.subr.mxu0 0.0
    %574 = vmatpush1.xpose.msra.mxu0 0.0
    %575 = vmatprep.subr.mxu0 0.0
    %576 = vmatpush1.xpose.msra.mxu0 0.0
    %577 = vmatprep.subr.mxu0 0.0
    %578 = vmatpush1.xpose.msra.mxu0 0.0
    %579 = vmatprep.subr.mxu0 0.0
    %580 = vmatpush1.xpose.msra.mxu0 0.0
    %581 = vmatprep.subr.mxu0 0.0
    %582 = vmatpush1.xpose.msra.mxu0 0.0
    %583 = vmatprep.subr.mxu0 0.0
    %584 = vmatpush1.xpose.msra.mxu0 0.0
    %585 = vmatprep.subr.mxu0 0.0
    %586 = vmatpush1.xpose.msra.mxu0 0.0
    %587 = vmatprep.subr.mxu0 0.0
    %588 = vmatpush1.xpose.msra.mxu0 0.0
    %589 = vmatprep.subr.mxu0 0.0
    %590 = vmatpush1.xpose.msra.mxu0 0.0
    %591 = vmatprep.mubr.f32.mxu0 0.0
    %592 = vmatmul.mubr.f32.gmra.mrb[0].mxu0 %v522
    %v593 = vpop.f32.mrb[0].mxu0
    %v594 = vadd.f32 0.0, %v593
    %v595 = vpop.f32.mrb[0].mxu0
    %596 = vdwg.mxu0
    %v598 = vrot.slane %v594, 4
    %599 = vrot.lane.b32.xlu0 %v598, 124
    %v600 = vpop.permute.xlu0 %599
    %v602 = vmax.f32 %v594, %v600
    %v603 = vsub.f32 %v594, %v602
    %v604 = vmul.f32 %v603, 1.442695
    %v605 = vpow.pop %v604
    %v607 = vrot.slane %v602, 4
    %608 = vrot.lane.b32.xlu0 %v607, 4
    %v609 = vpop.permute.xlu0 %608
    %v611 = vsub.f32 %v594, %v609
    %v612 = vmul.f32 %v611, 1.442695
    %v613 = vpow.pop %v612
    %v615 = vrot.slane %v613, 4
    %616 = vrot.lane.b32.xlu0 %v615, 124
    %v617 = vpop.permute.xlu0 %616
    %v619 = vadd.f32 %v605, %v617
    %v620 = vrcp.pop %v619
    %v621 = vmul.f32 %v605, %v620
    %v623 = vrot.slane %v619, 4
    %624 = vrot.lane.b32.xlu0 %v623, 4
    %v625 = vpop.permute.xlu0 %624
    %v627 = vrcp.pop %v625
    %v628 = vmul.f32 %v613, %v627
    %vm629 = vcmask 27648
    %v630 = vsel %vm629, %v621, 0.0
    %v631 = vrot.slane %v630, 4
    %v632 = vadd.f32 %v630, %v631
    %v633 = vrot.slane %v632, 2
    %v634 = vadd.f32 %v632, %v633
    %v635 = vrot.slane %v634, 1
    %v636 = vadd.f32 %v634, %v635
    %v638 = vrot.slane %v628, 4
    %vm640 = vcmask 60448
    %v641 = vsel %vm640, %v638, 0.0
    %v642 = vrot.slane %v641, 4
    %v643 = vadd.f32 %v641, %v642
    %v644 = vrot.slane %v643, 2
    %v645 = vadd.f32 %v643, %v644
    %v646 = vrot.slane %v645, 1
    %v647 = vadd.f32 %v645, %v646
    %vm648 = vcmask 31744
    %v649 = vsel %vm648, %v636, %v647
    %v650 = vlaneseq
    %v651 = vshrl.u32 %v650, 7
    %v652 = vlaneseq
    %v653 = vand.u32 %v652, 127
    %v654 = vmul.u32 %v651, 4
    %vm655 = vcmp.ge.s32.totalorder %v653, %v654
    %v656 = vadd.s32 %v651, 1
    %v657 = vmul.u32 %v656, 4
    %vm658 = vcmp.lt.s32.totalorder %v653, %v657
    %vm659 = vmand %vm655, %vm658
    %v660 = vlaneseq
    %v661 = vshrl.u32 %v660, 7
    %v662 = vsub.s32 0, %v661
    %v663 = vrot.slane %v649, %v662
    %v664 = vsel %vm659, %v663, 0.0
    %vm665 = vcmask 64512
    %v667 = vsel %vm665, %v664, 0
    %669 = vmatprep.subr.mxu0 0.0
    %670 = vmatpush1.msra.mxu0 %v518
    %671 = vmatprep.subr.mxu0 0.0
    %672 = vmatpush1.msra.mxu0 0.0
    %673 = vmatprep.subr.mxu0 0.0
    %674 = vmatpush1.msra.mxu0 0.0
    %675 = vmatprep.subr.mxu0 0.0
    %676 = vmatpush1.msra.mxu0 0.0
    %677 = vmatprep.subr.mxu0 0.0
    %678 = vmatpush1.msra.mxu0 0.0
    %679 = vmatprep.subr.mxu0 0.0
    %680 = vmatpush1.msra.mxu0 0.0
    %681 = vmatprep.subr.mxu0 0.0
    %682 = vmatpush1.msra.mxu0 0.0
    %683 = vmatprep.subr.mxu0 0.0
    %684 = vmatpush1.msra.mxu0 0.0
    %685 = vmatprep.subr.mxu0 0.0
    %686 = vmatpush1.msra.mxu0 0.0
    %687 = vmatprep.subr.mxu0 0.0
    %688 = vmatpush1.msra.mxu0 0.0
    %689 = vmatprep.subr.mxu0 0.0
    %690 = vmatpush1.msra.mxu0 0.0
    %691 = vmatprep.subr.mxu0 0.0
    %692 = vmatpush1.msra.mxu0 0.0
    %693 = vmatprep.subr.mxu0 0.0
    %694 = vmatpush1.msra.mxu0 0.0
    %695 = vmatprep.subr.mxu0 0.0
    %696 = vmatpush1.msra.mxu0 0.0
    %697 = vmatprep.subr.mxu0 0.0
    %698 = vmatpush1.msra.mxu0 0.0
    %699 = vmatprep.subr.mxu0 0.0
    %700 = vmatpush1.msra.mxu0 0.0
    %701 = vmatprep.subr.mxu0 0.0
    %702 = vmatpush1.msra.mxu0 0.0
    %703 = vmatprep.subr.mxu0 0.0
    %704 = vmatpush1.msra.mxu0 0.0
    %705 = vmatprep.subr.mxu0 0.0
    %706 = vmatpush1.msra.mxu0 0.0
    %707 = vmatprep.subr.mxu0 0.0
    %708 = vmatpush1.msra.mxu0 0.0
    %709 = vmatprep.subr.mxu0 0.0
    %710 = vmatpush1.msra.mxu0 0.0
    %711 = vmatprep.subr.mxu0 0.0
    %712 = vmatpush1.msra.mxu0 0.0
    %713 = vmatprep.subr.mxu0 0.0
    %714 = vmatpush1.msra.mxu0 0.0
    %715 = vmatprep.subr.mxu0 0.0
    %716 = vmatpush1.msra.mxu0 0.0
    %717 = vmatprep.subr.mxu0 0.0
    %718 = vmatpush1.msra.mxu0 0.0
    %719 = vmatprep.subr.mxu0 0.0
    %720 = vmatpush1.msra.mxu0 0.0
    %721 = vmatprep.subr.mxu0 0.0
    %722 = vmatpush1.msra.mxu0 0.0
    %723 = vmatprep.subr.mxu0 0.0
    %724 = vmatpush1.msra.mxu0 0.0
    %725 = vmatprep.subr.mxu0 0.0
    %726 = vmatpush1.msra.mxu0 0.0
    %727 = vmatprep.subr.mxu0 0.0
    %728 = vmatpush1.msra.mxu0 0.0
    %729 = vmatprep.subr.mxu0 0.0
    %730 = vmatpush1.msra.mxu0 0.0
    %731 = vmatprep.subr.mxu0 0.0
    %732 = vmatpush1.msra.mxu0 0.0
    %733 = vmatprep.mubr.f32.mxu0 0.0
    %734 = vmatmul.mubr.f32.gmra.mrb[0].mxu0 %v667
    %v735 = vpop.f32.mrb[0].mxu0
    %v736 = vadd.f32 0.0, %v735
    %v737 = vpop.f32.mrb[0].mxu0
    %738 = vdwg.mxu0
    %v739 = vld [vmem:[#allocation5 + $0xe0] sm:$0xff]
    %v740 = vld [vmem:[#allocation5 + $0xe8] sm:$0xff]
    %v741 = vld [vmem:[#allocation5 + $0xf0] sm:$0xff]
    %v742 = vld [vmem:[#allocation5 + $0xf8] sm:$0xff]
    %v743 = vld [vmem:[#allocation5 + $0x100] sm:$0xff]
    %v744 = vld [vmem:[#allocation5 + $0x108] sm:$0xff]
    %v745 = vld [vmem:[#allocation5 + $0x110] sm:$0xff]
    %v746 = vld [vmem:[#allocation5 + $0x118] sm:$0xff]
    %v747 = vld [vmem:[#allocation5 + $0x120] sm:$0xff]
    %v748 = vld [vmem:[#allocation5 + $0x128] sm:$0xff]
    %v749 = vld [vmem:[#allocation5 + $0x130] sm:$0xff]
    %v750 = vld [vmem:[#allocation5 + $0x138] sm:$0xff]
    %v751 = vld [vmem:[#allocation5 + $0x140] sm:$0xff]
    %v752 = vld [vmem:[#allocation5 + $0x148] sm:$0xff]
    %v753 = vld [vmem:[#allocation5 + $0x150] sm:$0xff]
    %v754 = vld [vmem:[#allocation5 + $0x158] sm:$0xff]
    %v755 = vld [vmem:[#allocation5 + $0x160] sm:$0x1]
    %v756 = vlaneseq
    %v757 = vshrl.u32 %v756, 7
    %v758 = vsub.s32 0, %v757
    %v759 = vrot.slane %v755, %v758
    %760 = vmatprep.subr.mxu0 0.0
    %761 = vmatpush1.msra.mxu0 %v739
    %762 = vmatprep.subr.mxu0 0.0
    %763 = vmatpush1.msra.mxu0 %v740
    %764 = vmatprep.subr.mxu0 0.0
    %765 = vmatpush1.msra.mxu0 %v741
    %766 = vmatprep.subr.mxu0 0.0
    %767 = vmatpush1.msra.mxu0 %v742
    %768 = vmatprep.subr.mxu0 0.0
    %769 = vmatpush1.msra.mxu0 %v743
    %770 = vmatprep.subr.mxu0 0.0
    %771 = vmatpush1.msra.mxu0 %v744
    %772 = vmatprep.subr.mxu0 0.0
    %773 = vmatpush1.msra.mxu0 %v745
    %774 = vmatprep.subr.mxu0 0.0
    %775 = vmatpush1.msra.mxu0 %v746
    %776 = vmatprep.subr.mxu0 0.0
    %777 = vmatpush1.msra.mxu0 %v747
    %778 = vmatprep.subr.mxu0 0.0
    %779 = vmatpush1.msra.mxu0 %v748
    %780 = vmatprep.subr.mxu0 0.0
    %781 = vmatpush1.msra.mxu0 %v749
    %782 = vmatprep.subr.mxu0 0.0
    %783 = vmatpush1.msra.mxu0 %v750
    %784 = vmatprep.subr.mxu0 0.0
    %785 = vmatpush1.msra.mxu0 %v751
    %786 = vmatprep.subr.mxu0 0.0
    %787 = vmatpush1.msra.mxu0 %v752
    %788 = vmatprep.subr.mxu0 0.0
    %789 = vmatpush1.msra.mxu0 %v753
    %790 = vmatprep.subr.mxu0 0.0
    %791 = vmatpush1.msra.mxu0 %v754
    %792 = vmatprep.subr.mxu0 0.0
    %793 = vmatpush1.msra.mxu0 0.0
    %794 = vmatprep.subr.mxu0 0.0
    %795 = vmatpush1.msra.mxu0 0.0
    %796 = vmatprep.subr.mxu0 0.0
    %797 = vmatpush1.msra.mxu0 0.0
    %798 = vmatprep.subr.mxu0 0.0
    %799 = vmatpush1.msra.mxu0 0.0
    %800 = vmatprep.subr.mxu0 0.0
    %801 = vmatpush1.msra.mxu0 0.0
    %802 = vmatprep.subr.mxu0 0.0
    %803 = vmatpush1.msra.mxu0 0.0
    %804 = vmatprep.subr.mxu0 0.0
    %805 = vmatpush1.msra.mxu0 0.0
    %806 = vmatprep.subr.mxu0 0.0
    %807 = vmatpush1.msra.mxu0 0.0
    %808 = vmatprep.subr.mxu0 0.0
    %809 = vmatpush1.msra.mxu0 0.0
    %810 = vmatprep.subr.mxu0 0.0
    %811 = vmatpush1.msra.mxu0 0.0
    %812 = vmatprep.subr.mxu0 0.0
    %813 = vmatpush1.msra.mxu0 0.0
    %814 = vmatprep.subr.mxu0 0.0
    %815 = vmatpush1.msra.mxu0 0.0
    %816 = vmatprep.subr.mxu0 0.0
    %817 = vmatpush1.msra.mxu0 0.0
    %818 = vmatprep.subr.mxu0 0.0
    %819 = vmatpush1.msra.mxu0 0.0
    %820 = vmatprep.subr.mxu0 0.0
    %821 = vmatpush1.msra.mxu0 0.0
    %822 = vmatprep.subr.mxu0 0.0
    %823 = vmatpush1.msra.mxu0 0.0
    %824 = vmatprep.mubr.f32.mxu0 0.0
    %825 = vmatmul.mubr.f32.gmra.mrb[0].mxu0 %v736
    %v826 = vpop.f32.mrb[0].mxu0
    %v827 = vadd.f32 %v759, %v826
    %v828 = vpop.f32.mrb[0].mxu0
    %829 = vdwg.mxu0
    %vm830 = vcmp.lt.s32.totalorder %v653, 8
    %v831 = vsel %vm830, %v827, -1e+30
    %v832 = vsel %vm44, %v831, -inf
    %833 = vmax.xlane.f32.xlu0 %v832
    %v834 = vpop.xlane.xlu0 %833
    %v835 = vsub.f32 %v827, %v834
    %v836 = vmul.f32 %v835, 1.442695
    %v837 = vpow.pop %v836
    %v838 = vsel %vm830, %v837, 0.0
    %v839 = vsel %vm44, %v838, 0.0
    %840 = vadd.xlane.f32.xlu0 %v839
    %v841 = vpop.xlane.xlu0 %840
    %v842 = vrcp.pop %v841
    %v843 = vmul.f32 %v838, %v842
    %v846 = vcombine.low %v736, %v843
    %v848 = vunpack.c.l.s4 1983009808
    %v849 = vunpack.c.0.s8 %v848
    %v850 = vlaneseq
    %v851 = vshrl.u32 %v850, 7
    %v852 = vsub.s32 %v849, %v851
    %v853 = vrot.slane %v846, %v852
    %855 = vst [vmem:[#allocation7] sm:$0xf] %v853
    // Predicated region
    $region18: #{tpu_custom_call.1} parent=1 // pred_check
      _
    $region19: #{tpu_custom_call.1} parent=1 // pred_check_branch
      %857 = sbr.rel (0) target = $region21
    $region20: #{tpu_custom_call.1} parent=1 // pred_region
      %s859 = ssub.s32 64, 64
      %860 = vsyncadd [#allocation4], %s859
      %s862 = sshll.u32 [#allocation7], 4
      %s863 = int_to_ptr.vmem [resolvable:$true] %s862
      %865 = dma.vmem_to_hbm [thread:$0]  %s863, 64, %s2, [#allocation4]
    $region21: #{tpu_custom_call.1} parent=1 // pred_fallthru
      _
    // Predicated region
    $region22: #{tpu_custom_call.1} parent=1 // pred_check
      _
    $region23: #{tpu_custom_call.1} parent=1 // pred_check_branch
      %867 = sbr.rel (0) target = $region25
    $region24: #{tpu_custom_call.1} parent=1 // pred_region
      %868 = dma.done [#allocation4], 64
    $region25: #{tpu_custom_call.1} parent=1 // pred_fallthru
      _
    %869 = vsyncpa [#allocation3], 1
    %870 = vsyncpa [#allocation6], 1
    %871 = vsyncpa [#allocation4], 1

</llo_original>
